<compile_context>
chip_gen: v6e
topology: v6e:2x2x1
jax: 0.10.0
libtpu: 0.0.40
codegen_flags: <defaults>
</compile_context>

<pallas_src>
import functools

import jax
import jax.numpy as jnp
from jax.experimental import pallas as pl
from jax.experimental.pallas import tpu as pltpu


def _round_up(x, m):
    return ((x + m - 1) // m) * m


def _sublanes(dtype):
    # rows per vreg tile: 8 for 4-byte dtypes, 16 for bf16, 32 for 1-byte dtypes
    return 8 * (4 // jnp.dtype(dtype).itemsize)


def _conv_block_kernel(*refs, offsets, norm_fn, acti_fn, eps, inv_count,
                       wp, wout1, lout_valid):
    # Ref layouts (per grid step = one batch sample):
    #   x_ref   : (1, Cin, Lin)        flat zero-padded input slab (compute dtype)
    #   w_ref   : (Cout_w, K)          fused conv weight, K = KH*KW*Cin
    #   b_ref   : (Cout_o, 1)          conv bias            (norm_fn == 'none' only)
    #   g_ref, bt_ref : (Cout_o, 1)    InstanceNorm affine  (instancenorm only)
    #   o_ref   : (1, Cout_o, Lout_p)  lane-dense output (spatial on lanes)
    #   col_ref : (K, TL)              im2col-in-VMEM scratch (one lane chunk)
    #   acc_ref : (Cout_o, Lout_p)     f32 raw-conv scratch (instancenorm only)
    if norm_fn == 'instancenorm':
        x_ref, w_ref, g_ref, bt_ref, o_ref, col_ref, acc_ref = refs
    else:
        x_ref, w_ref, b_ref, o_ref, col_ref = refs

    cin = x_ref.shape[1]
    cout_o = o_ref.shape[1]
    tl = col_ref.shape[1]
    num_chunks = o_ref.shape[2] // tl

    def conv_chunk(c0):
        # Stack the KH*KW shifted (Cin, TL) slices into the VMEM im2col scratch,
        # then run ONE fused MXU matmul with contraction K = KH*KW*Cin (instead
        # of KH*KW tiny K=Cin matmuls with repeated weight pushes).
        for kk, off in enumerate(offsets):                 # static, KH*KW small
            col_ref[kk * cin:(kk + 1) * cin, :] = (
                x_ref[0, :, c0 + off:c0 + off + tl])
        z = jnp.dot(w_ref[...], col_ref[...], preferred_element_type=jnp.float32)
        return z[:cout_o, :]                               # drop bf16 sublane-pad rows

    def activate(z):
        if acti_fn == 'relu':
            return jnp.maximum(z, 0.0)
        if acti_fn == 'lrelu':
            return jnp.where(z >= 0, z, 0.01 * z)          # nn.LeakyReLU default slope
        if acti_fn == 'sigmoid':
            return jax.nn.sigmoid(z)
        if acti_fn == 'tanh':
            return jnp.tanh(z)
        return z                                           # 'none'

    if norm_fn == 'none':
        bias = b_ref[...]                                  # (Cout_o,1) bcast on lanes
        for c in range(num_chunks):                        # static in-kernel tiling
            z = conv_chunk(c * tl) + bias
            o_ref[0, :, c * tl:(c + 1) * tl] = activate(z).astype(o_ref.dtype)
    else:
        # InstanceNorm: single masked-stats pass over the chunks, then a folded
        # per-channel scale/shift epilogue (2 VALU ops per element).
        s1 = jnp.zeros((cout_o, 1), jnp.float32)
        s2 = jnp.zeros((cout_o, 1), jnp.float32)
        for c in range(num_chunks):
            z = conv_chunk(c * tl)
            acc_ref[:, c * tl:(c + 1) * tl] = z
            # validity mask generated in-kernel (iota + compare), no HBM mask input
            col = c * tl + jax.lax.broadcasted_iota(jnp.int32, (1, tl), 1)
            m = jnp.logical_and(col < lout_valid,
                                col % wp < wout1).astype(jnp.float32)
            zm = z * m
            s1 = s1 + jnp.sum(zm, axis=1, keepdims=True)
            s2 = s2 + jnp.sum(zm * z, axis=1, keepdims=True)
        mean = s1 * inv_count
        var = jnp.maximum(s2 * inv_count - mean * mean, 0.0)   # clamp cancellation
        scale = g_ref[...] * jax.lax.rsqrt(var + eps)          # rsqrt -> EUP slot
        shift = bt_ref[...] - mean * scale
        z = acc_ref[...] * scale + shift
        o_ref[0] = activate(z).astype(o_ref.dtype)


def conv2d_block(x_nchw, weight_hwio, bias, gamma, beta, *, stride=1, padding=0,
                 norm_fn='none', acti_fn='none', eps=1e-5,
                 compute_dtype=jnp.bfloat16, lane_tile=None):
    """Forward pass of Conv2dBlock. Returns NCHW output, same as PyTorch."""
    if norm_fn not in ('none', 'instancenorm'):
        raise NotImplementedError('norm_fn=' + str(norm_fn))
    if acti_fn not in ('none', 'relu', 'lrelu', 'sigmoid', 'tanh'):
        raise Exception('Unsupported activation function: ' + str(acti_fn))
    if stride != 1 and norm_fn != 'none':
        # TODO(synk): stride>1 fused with InstanceNorm needs in-kernel subsampling
        #             before the statistics; not implemented.
        raise NotImplementedError('stride>1 with norm_fn=' + str(norm_fn))

    N, Cin, H, W = x_nchw.shape
    KH, KW, _, Cout = weight_hwio.shape
    out_dtype = x_nchw.dtype
    p = padding
    Hp, Wp = H + 2 * p, W + 2 * p

    # The kernel computes the stride-1 output grid; stride>1 (norm='none' only) is
    # subsampled afterwards (bias/activation are elementwise, so this is exact).
    # TODO(synk): subsample in-kernel for stride>1 to avoid the wasted flops/stores.
    Hout1, Wout1 = Hp - KH + 1, Wp - KW + 1
    Lout = Hout1 * Wp                       # flat output rows keep the padded width
    max_off = (KH - 1) * Wp + (KW - 1)
    Kdim = KH * KW * Cin

    # Sublane-align channel (row) axes: 16 rows/vreg for bf16, 8 for f32.
    Cout_w = _round_up(Cout, _sublanes(compute_dtype))   # weight rows (MXU operand)
    Cout_o = _round_up(Cout, _sublanes(out_dtype))       # output rows (HBM store)

    # In-kernel spatial (lane) tiling bounds the im2col scratch (fits v7x VMEM);
    # >=512-lane chunks keep the MXU N-dim fed for big outputs.
    if lane_tile is None:
        lane_tile = Lout if Lout <= 2048 else 512
    TL = int(lane_tile)
    num_chunks = -(-Lout // TL)
    Lout_p = num_chunks * TL
    Lin = Lout_p + max_off                  # every shifted chunk read stays in bounds

    # ---- glue: pad + flatten input once, fuse weight taps once (one HBM pass) ----
    xp = jnp.pad(x_nchw, ((0, 0), (0, 0), (p, p), (p, p)))
    x_flat = xp.reshape(N, Cin, Hp * Wp)
    x_flat = jnp.pad(x_flat, ((0, 0), (0, 0), (0, Lin - Hp * Wp)))
    x_flat = x_flat.astype(compute_dtype)

    # (KH, KW, Cin, Cout) -> (Cout_w, KH*KW*Cin); K order matches im2col stacking.
    w = jnp.transpose(weight_hwio, (3, 0, 1, 2)).reshape(Cout, Kdim)
    w = jnp.pad(w, ((0, Cout_w - Cout), (0, 0))).astype(compute_dtype)

    offsets = tuple(kh * Wp + kw for kh in range(KH) for kw in range(KW))

    in_arrays = [x_flat, w]
    in_specs = [
        pl.BlockSpec((1, Cin, Lin), lambda n: (n, 0, 0)),
        pl.BlockSpec((Cout_w, Kdim), lambda n: (0, 0)),
    ]
    scratch_shapes = [pltpu.VMEM((Kdim, TL), compute_dtype)]
    if norm_fn == 'none':
        b2 = jnp.pad(bias.astype(jnp.float32).reshape(Cout, 1),
                     ((0, Cout_o - Cout), (0, 0)))
        in_arrays.append(b2)
        in_specs.append(pl.BlockSpec((Cout_o, 1), lambda n: (0, 0)))
    else:
        g2 = jnp.pad(gamma.astype(jnp.float32).reshape(Cout, 1),
                     ((0, Cout_o - Cout), (0, 0)))
        bt2 = jnp.pad(beta.astype(jnp.float32).reshape(Cout, 1),
                      ((0, Cout_o - Cout), (0, 0)))
        in_arrays += [g2, bt2]
        in_specs += [pl.BlockSpec((Cout_o, 1), lambda n: (0, 0)),
                     pl.BlockSpec((Cout_o, 1), lambda n: (0, 0))]
        scratch_shapes.append(pltpu.VMEM((Cout_o, Lout_p), jnp.float32))

    kernel = functools.partial(
        _conv_block_kernel, offsets=offsets, norm_fn=norm_fn, acti_fn=acti_fn,
        eps=eps, inv_count=1.0 / float(Hout1 * Wout1),
        wp=Wp, wout1=Wout1, lout_valid=Lout)

    # Generation-aware VMEM budget (v5e/v6e: 128 MiB, v7x: 64 MiB), counting the
    # double-buffered pipeline copies plus the in-kernel scratch.
    try:
        vmem_cap = pltpu.get_tpu_info().vmem_capacity_bytes
    except Exception:
        vmem_cap = 64 * 2**20                # conservative fallback (v7x-sized)
    in_b = jnp.dtype(compute_dtype).itemsize
    out_b = jnp.dtype(out_dtype).itemsize
    blk = 2 * (Cin * Lin * in_b + Cout_w * Kdim * in_b + 3 * Cout_o * 4
               + Cout_o * Lout_p * out_b)
    blk += Kdim * TL * in_b
    if norm_fn != 'none':
        blk += Cout_o * Lout_p * 4
    vmem_limit = int(min(max(2 * blk, 16 * 2**20), 0.75 * vmem_cap))

    flops = 2 * N * Kdim * Cout * Lout
    transcendentals = N * Cout * Lout if acti_fn in ('sigmoid', 'tanh') else 0
    bytes_accessed = (N * Cin * Lin * in_b + Cout_w * Kdim * in_b
                      + 3 * Cout_o * 4 + N * Cout_o * Lout_p * out_b)

    # TODO(synk): for very large per-sample slabs on v7x, promote the in-kernel
    #             chunk loop to a grid axis with two-sweep instance-norm stats, and
    #             stack NB samples along the lane axis when Cout/Lout are tiny (v6e).
    out_flat = pl.pallas_call(
        kernel,
        out_shape=jax.ShapeDtypeStruct((N, Cout_o, Lout_p), out_dtype),
        grid=(N,),
        in_specs=in_specs,
        out_specs=pl.BlockSpec((1, Cout_o, Lout_p), lambda n: (n, 0, 0)),
        scratch_shapes=scratch_shapes,
        compiler_params=pltpu.CompilerParams(
            dimension_semantics=("parallel",),        # batch feeds both v7x TCs
            vmem_limit_bytes=vmem_limit),
        cost_estimate=pl.CostEstimate(flops=flops,
                                      transcendentals=transcendentals,
                                      bytes_accessed=bytes_accessed),
    )(*in_arrays)

    # (N, Cout_o, Lout_p) -> NCHW: drop channel/lane padding, un-flatten rows, drop
    # the Wp -> Wout1 columns.
    # TODO(synk): downstream consumers that accept the lane-dense padded layout can
    #             skip this crop (it costs one extra HBM read+write of the output).
    out = out_flat[:, :Cout, :Lout].reshape(N, Cout, Hout1, Wp)[:, :, :, :Wout1]
    if stride > 1:
        out = out[:, :, ::stride, ::stride]           # exact: bias/act elementwise
    return out


def reference(x_nchw, weight_hwio, bias, gamma, beta, *, stride, padding,
              norm_fn, acti_fn, eps=1e-5):
    """Pure-JAX reference matching the PyTorch forward."""
    w_oihw = jnp.transpose(weight_hwio, (3, 2, 0, 1))
    y = jax.lax.conv_general_dilated(
        x_nchw, w_oihw, (stride, stride), [(padding, padding)] * 2,
        dimension_numbers=('NCHW', 'OIHW', 'NCHW'))
    y = y + bias.reshape(1, -1, 1, 1)
    if norm_fn == 'instancenorm':
        mean = jnp.mean(y, axis=(2, 3), keepdims=True)
        var = jnp.var(y, axis=(2, 3), keepdims=True)
        y = (y - mean) / jnp.sqrt(var + eps)
        y = y * gamma.reshape(1, -1, 1, 1) + beta.reshape(1, -1, 1, 1)
    if acti_fn == 'relu':
        y = jnp.maximum(y, 0.0)
    elif acti_fn == 'lrelu':
        y = jnp.where(y >= 0, y, 0.01 * y)
    elif acti_fn == 'sigmoid':
        y = jax.nn.sigmoid(y)
    elif acti_fn == 'tanh':
        y = jnp.tanh(y)
    return y


if __name__ == "__main__":
    # Module config: Conv2dBlock(n_in=4, n_out=8, kernel_size=3, padding=1, ...)
    N, Cin, H, W = 2, 4, 16, 16
    Cout, KH, KW = 8, 3, 3
    padding = 1

    key = jax.random.PRNGKey(0)
    kw_, kb_, kx_ = jax.random.split(key, 3)

    # xavier_normal_ init for the conv weight (gain = 1)
    fan_in = Cin * KH * KW
    fan_out = Cout * KH * KW
    std = (2.0 / (fan_in + fan_out)) ** 0.5
    weight = std * jax.random.normal(kw_, (KH, KW, Cin, Cout), jnp.float32)

    # conv bias (only used when norm_fn == 'none'), PyTorch-style uniform init
    bound = 1.0 / (fan_in ** 0.5)
    bias_full = jax.random.uniform(kb_, (Cout,), jnp.float32, -bound, bound)
    gamma = jnp.ones((Cout,), jnp.float32)   # InstanceNorm2d(affine=True) weight init
    beta = jnp.zeros((Cout,), jnp.float32)   # InstanceNorm2d(affine=True) bias init

    x = jax.random.normal(kx_, (N, Cin, H, W), jnp.float32)

    configs = [
        # (norm_fn, acti_fn, stride, compute_dtype, lane_tile, tolerance)
        ('none', 'lrelu', 1, jnp.float32, None, 1e-4),          # exact-math checks
        ('instancenorm', 'relu', 1, jnp.float32, None, 1e-4),
        ('none', 'tanh', 1, jnp.float32, 128, 1e-4),            # multi-chunk GEMM path
        ('instancenorm', 'sigmoid', 1, jnp.float32, 128, 1e-4), # chunked stats path
        ('none', 'relu', 2, jnp.float32, None, 1e-4),           # stride-2 path
        ('none', 'lrelu', 1, jnp.bfloat16, None, 5e-2),         # perf-default bf16
        ('instancenorm', 'relu', 1, jnp.bfloat16, None, 5e-2),
    ]
    for norm_fn, acti_fn, stride, cdt, lt, tol in configs:
        # Module has no conv bias when a norm follows; keep zeros there.
        bias = bias_full if norm_fn == 'none' else jnp.zeros((Cout,), jnp.float32)
        out = conv2d_block(x, weight, bias, gamma, beta,
                           stride=stride, padding=padding,
                           norm_fn=norm_fn, acti_fn=acti_fn,
                           compute_dtype=cdt, lane_tile=lt)
        out = jax.block_until_ready(out)
        ref = reference(x, weight, bias, gamma, beta,
                        stride=stride, padding=padding,
                        norm_fn=norm_fn, acti_fn=acti_fn)
        ho = (H + 2 * padding - KH) // stride + 1
        wo = (W + 2 * padding - KW) // stride + 1
        assert out.shape == (N, Cout, ho, wo), (out.shape, norm_fn, acti_fn)
        assert jnp.allclose(out, ref, atol=tol, rtol=tol), (norm_fn, acti_fn,
                                                            str(cdt), lt)

    print("KERNEL_OK")
</pallas_src>

<mosaic_0001>
module attributes {stable_mosaic.version = 11 : i64} {
  func.func @_conv_block_kernel(%arg0: i32, %arg1: memref<1x4x326xf32, #tpu.memory_space<vmem>>, %arg2: memref<8x36xf32, #tpu.memory_space<vmem>>, %arg3: memref<8x1xf32, #tpu.memory_space<vmem>>, %arg4: memref<1x8x288xf32, #tpu.memory_space<vmem>>, %arg5: memref<36x288xf32, #tpu.memory_space<vmem>>) attributes {dimension_semantics = [#tpu.dimension_semantics<parallel>], iteration_bounds = array<i64: 2>, scalar_prefetch = 0 : i64, scratch_operands = 1 : i64, tpu.core_type = #tpu.core_type<tc>, window_params = [{transform_indices = @transform_0, window_bounds = array<i64: 1, 4, 326>}, {pipeline_mode = #tpu.pipeline_mode<synchronous>, transform_indices = @transform_1, window_bounds = array<i64: 8, 36>}, {pipeline_mode = #tpu.pipeline_mode<synchronous>, transform_indices = @transform_2, window_bounds = array<i64: 8, 1>}, {transform_indices = @transform_3, window_bounds = array<i64: 1, 8, 288>}]} {
    %c0 = arith.constant 0 : index
    %c0_0 = arith.constant 0 : index
    %0 = vector.load %arg3[%c0, %c0_0] : memref<8x1xf32, #tpu.memory_space<vmem>>, vector<8x1xf32>
    %c0_1 = arith.constant 0 : index
    %c0_2 = arith.constant 0 : index
    %c0_3 = arith.constant 0 : index
    %1 = vector.load %arg1[%c0_1, %c0_2, %c0_3] : memref<1x4x326xf32, #tpu.memory_space<vmem>>, vector<1x4x288xf32>
    %2 = vector.shape_cast %1 : vector<1x4x288xf32> to vector<4x288xf32>
    %c0_4 = arith.constant 0 : index
    %c0_5 = arith.constant 0 : index
    %3 = vector.load %arg5[%c0_4, %c0_5] : memref<36x288xf32, #tpu.memory_space<vmem>>, vector<4x288xf32>
    tpu.vector_store %arg5[%c0_4, %c0_5], %2 {strides = array<i32>} : memref<36x288xf32, #tpu.memory_space<vmem>>, vector<4x288xf32>,
    %c0_6 = arith.constant 0 : index
    %c0_7 = arith.constant 0 : index
    %c1 = arith.constant 1 : index
    %4 = vector.load %arg1[%c0_6, %c0_7, %c1] : memref<1x4x326xf32, #tpu.memory_space<vmem>>, vector<1x4x288xf32>
    %5 = vector.shape_cast %4 : vector<1x4x288xf32> to vector<4x288xf32>
    %c4 = arith.constant 4 : index
    %c0_8 = arith.constant 0 : index
    %6 = vector.load %arg5[%c4, %c0_8] : memref<36x288xf32, #tpu.memory_space<vmem>>, vector<4x288xf32>
    tpu.vector_store %arg5[%c4, %c0_8], %5 {strides = array<i32>} : memref<36x288xf32, #tpu.memory_space<vmem>>, vector<4x288xf32>,
    %c0_9 = arith.constant 0 : index
    %c0_10 = arith.constant 0 : index
    %c2 = arith.constant 2 : index
    %7 = vector.load %arg1[%c0_9, %c0_10, %c2] : memref<1x4x326xf32, #tpu.memory_space<vmem>>, vector<1x4x288xf32>
    %8 = vector.shape_cast %7 : vector<1x4x288xf32> to vector<4x288xf32>
    %c8 = arith.constant 8 : index
    %c0_11 = arith.constant 0 : index
    %9 = vector.load %arg5[%c8, %c0_11] : memref<36x288xf32, #tpu.memory_space<vmem>>, vector<4x288xf32>
    tpu.vector_store %arg5[%c8, %c0_11], %8 {strides = array<i32>} : memref<36x288xf32, #tpu.memory_space<vmem>>, vector<4x288xf32>,
    %c0_12 = arith.constant 0 : index
    %c0_13 = arith.constant 0 : index
    %c18 = arith.constant 18 : index
    %10 = vector.load %arg1[%c0_12, %c0_13, %c18] : memref<1x4x326xf32, #tpu.memory_space<vmem>>, vector<1x4x288xf32>
    %11 = vector.shape_cast %10 : vector<1x4x288xf32> to vector<4x288xf32>
    %c12 = arith.constant 12 : index
    %c0_14 = arith.constant 0 : index
    %12 = vector.load %arg5[%c12, %c0_14] : memref<36x288xf32, #tpu.memory_space<vmem>>, vector<4x288xf32>
    tpu.vector_store %arg5[%c12, %c0_14], %11 {strides = array<i32>} : memref<36x288xf32, #tpu.memory_space<vmem>>, vector<4x288xf32>,
    %c0_15 = arith.constant 0 : index
    %c0_16 = arith.constant 0 : index
    %c19 = arith.constant 19 : index
    %13 = vector.load %arg1[%c0_15, %c0_16, %c19] : memref<1x4x326xf32, #tpu.memory_space<vmem>>, vector<1x4x288xf32>
    %14 = vector.shape_cast %13 : vector<1x4x288xf32> to vector<4x288xf32>
    %c16 = arith.constant 16 : index
    %c0_17 = arith.constant 0 : index
    %15 = vector.load %arg5[%c16, %c0_17] : memref<36x288xf32, #tpu.memory_space<vmem>>, vector<4x288xf32>
    tpu.vector_store %arg5[%c16, %c0_17], %14 {strides = array<i32>} : memref<36x288xf32, #tpu.memory_space<vmem>>, vector<4x288xf32>,
    %c0_18 = arith.constant 0 : index
    %c0_19 = arith.constant 0 : index
    %c20 = arith.constant 20 : index
    %16 = vector.load %arg1[%c0_18, %c0_19, %c20] : memref<1x4x326xf32, #tpu.memory_space<vmem>>, vector<1x4x288xf32>
    %17 = vector.shape_cast %16 : vector<1x4x288xf32> to vector<4x288xf32>
    %c20_20 = arith.constant 20 : index
    %c0_21 = arith.constant 0 : index
    %18 = vector.load %arg5[%c20_20, %c0_21] : memref<36x288xf32, #tpu.memory_space<vmem>>, vector<4x288xf32>
    tpu.vector_store %arg5[%c20_20, %c0_21], %17 {strides = array<i32>} : memref<36x288xf32, #tpu.memory_space<vmem>>, vector<4x288xf32>,
    %c0_22 = arith.constant 0 : index
    %c0_23 = arith.constant 0 : index
    %c36 = arith.constant 36 : index
    %19 = vector.load %arg1[%c0_22, %c0_23, %c36] : memref<1x4x326xf32, #tpu.memory_space<vmem>>, vector<1x4x288xf32>
    %20 = vector.shape_cast %19 : vector<1x4x288xf32> to vector<4x288xf32>
    %c24 = arith.constant 24 : index
    %c0_24 = arith.constant 0 : index
    %21 = vector.load %arg5[%c24, %c0_24] : memref<36x288xf32, #tpu.memory_space<vmem>>, vector<4x288xf32>
    tpu.vector_store %arg5[%c24, %c0_24], %20 {strides = array<i32>} : memref<36x288xf32, #tpu.memory_space<vmem>>, vector<4x288xf32>,
    %c0_25 = arith.constant 0 : index
    %c0_26 = arith.constant 0 : index
    %c37 = arith.constant 37 : index
    %22 = vector.load %arg1[%c0_25, %c0_26, %c37] : memref<1x4x326xf32, #tpu.memory_space<vmem>>, vector<1x4x288xf32>
    %23 = vector.shape_cast %22 : vector<1x4x288xf32> to vector<4x288xf32>
    %c28 = arith.constant 28 : index
    %c0_27 = arith.constant 0 : index
    %24 = vector.load %arg5[%c28, %c0_27] : memref<36x288xf32, #tpu.memory_space<vmem>>, vector<4x288xf32>
    tpu.vector_store %arg5[%c28, %c0_27], %23 {strides = array<i32>} : memref<36x288xf32, #tpu.memory_space<vmem>>, vector<4x288xf32>,
    %c0_28 = arith.constant 0 : index
    %c0_29 = arith.constant 0 : index
    %c38 = arith.constant 38 : index
    %25 = vector.load %arg1[%c0_28, %c0_29, %c38] : memref<1x4x326xf32, #tpu.memory_space<vmem>>, vector<1x4x288xf32>
    %26 = vector.shape_cast %25 : vector<1x4x288xf32> to vector<4x288xf32>
    %c32 = arith.constant 32 : index
    %c0_30 = arith.constant 0 : index
    %27 = vector.load %arg5[%c32, %c0_30] : memref<36x288xf32, #tpu.memory_space<vmem>>, vector<4x288xf32>
    tpu.vector_store %arg5[%c32, %c0_30], %26 {strides = array<i32>} : memref<36x288xf32, #tpu.memory_space<vmem>>, vector<4x288xf32>,
    %c0_31 = arith.constant 0 : index
    %c0_32 = arith.constant 0 : index
    %28 = vector.load %arg2[%c0_31, %c0_32] : memref<8x36xf32, #tpu.memory_space<vmem>>, vector<8x36xf32>
    %c0_33 = arith.constant 0 : index
    %c0_34 = arith.constant 0 : index
    %29 = vector.load %arg5[%c0_33, %c0_34] : memref<36x288xf32, #tpu.memory_space<vmem>>, vector<36x288xf32>
    %cst = arith.constant dense<0.000000e+00> : vector<8x288xf32>
    %30 = tpu.matmul %28, %29, %cst {dimension_numbers = #tpu.dot_dimension_numbers<[1], [0], [0], [1], [0, 0, 1, 1], [], []>} : vector<8x36xf32>, vector<36x288xf32>, vector<8x288xf32> -> vector<8x288xf32>
    %31 = vector.broadcast %0 : vector<8x1xf32> to vector<8x288xf32>
    %32 = arith.addf %30, %31 : vector<8x288xf32>
    %cst_35 = arith.constant 0.000000e+00 : f32
    %33 = vector.broadcast %cst_35 : f32 to vector<8x288xf32>
    %34 = arith.cmpf oge, %32, %33 : vector<8x288xf32>
    %cst_36 = arith.constant 0.00999999977 : f32
    %35 = vector.broadcast %cst_36 : f32 to vector<8x288xf32>
    %36 = arith.mulf %35, %32 : vector<8x288xf32>
    %37 = arith.select %34, %32, %36 : vector<8x288xi1>, vector<8x288xf32>
    %c0_37 = arith.constant 0 : index
    %c0_38 = arith.constant 0 : index
    %c0_39 = arith.constant 0 : index
    %38 = vector.load %arg4[%c0_37, %c0_38, %c0_39] : memref<1x8x288xf32, #tpu.memory_space<vmem>>, vector<1x8x288xf32>
    %39 = vector.shape_cast %38 : vector<1x8x288xf32> to vector<8x288xf32>
    %40 = vector.shape_cast %37 : vector<8x288xf32> to vector<1x8x288xf32>
    tpu.vector_store %arg4[%c0_37, %c0_38, %c0_39], %40 {strides = array<i32>} : memref<1x8x288xf32, #tpu.memory_space<vmem>>, vector<1x8x288xf32>,
    return
  }
  func.func @transform_0(%arg0: i32) -> (i32, i32, i32) {
    %c0_i32 = arith.constant 0 : i32
    %c0_i32_0 = arith.constant 0 : i32
    %c0_i32_1 = arith.constant 0 : i32
    return %arg0, %c0_i32, %c0_i32_0 : i32, i32, i32
  }
  func.func @transform_1(%arg0: i32) -> (i32, i32) {
    %c0_i32 = arith.constant 0 : i32
    %c0_i32_0 = arith.constant 0 : i32
    %c0_i32_1 = arith.constant 0 : i32
    return %c0_i32, %c0_i32_0 : i32, i32
  }
  func.func @transform_2(%arg0: i32) -> (i32, i32) {
    %c0_i32 = arith.constant 0 : i32
    %c0_i32_0 = arith.constant 0 : i32
    %c0_i32_1 = arith.constant 0 : i32
    return %c0_i32, %c0_i32_0 : i32, i32
  }
  func.func @transform_3(%arg0: i32) -> (i32, i32, i32) {
    %c0_i32 = arith.constant 0 : i32
    %c0_i32_0 = arith.constant 0 : i32
    %c0_i32_1 = arith.constant 0 : i32
    return %arg0, %c0_i32, %c0_i32_0 : i32, i32, i32
  }
}

</mosaic_0001>

<llo_original>
// kernel: tpu_custom_call.1
$region0: #{tpu_custom_call.1}
  #allocation0 [shape = 'u32[]', space=smem, size = 0x4, offset = 0x4, fixed_abs, tag = 'smem constant byte address 0x4 - core index']
  #allocation1 [shape = 'u32[144,128]{1,0:T(1,128)}', space=vmem, size = 0x12000, scoped, tag = 'internal scratch']
  #allocation2 [shape = 'f32[36,288]{1,0:T(8,128)}', space=vmem, size = 0xf000, scoped, tag = 'scratch operand']
  %s0 = inlined_call_operand.hbm [shape: f32[2,4,326], index: 0, kind: input, shape index: {}]
  %s1 = inlined_call_operand.vmem [shape: f32[8,36], index: 1, kind: input, shape index: {}]
  %s2 = inlined_call_operand.vmem [shape: f32[8,1], index: 2, kind: input, shape index: {}]
  %s3 = inlined_call_operand.hbm [shape: f32[2,8,288], index: 3, kind: output, shape index: {}]
  %s4 = sld [smem:[#allocation0]]
  $region49: #{tpu_custom_call.1} parent=0
    _
  %s6 = ssub.s32 1, %s4
  %s7 = scalar_select 0, %s6, %s4
  $region1: #{tpu_custom_call.1} parent=0
    #allocation3 [shape = 'u8[12288]{0}', space=vmem, size = 0x3000, scoped, tag = 'input window, operand 0']
    #allocation4 [shape = 's32[2]{0}', space=sflag, size = 0x8, scoped, tag = 'scoped memory for tpu_custom_call.1']
    #allocation5 [shape = 's32[2]{0}', space=sflag, size = 0x8, scoped, tag = 'scoped memory for tpu_custom_call.1']
    #allocation6 [shape = 'u8[24576]{0}', space=vmem, size = 0x6000, scoped, tag = 'output window, operand 0']
    %8 = vsyncpa [#allocation4], 0
    %s9 = scalar_lea.sflag [#allocation4], 1
    %10 = vsyncpa %s9, 0
    %11 = vsyncpa [#allocation5], 0
    %s12 = scalar_lea.sflag [#allocation5], 1
    %13 = vsyncpa %s12, 0
    loop: start=0, step=1, limit=4
    $region2: #{tpu_custom_call.1} parent=1 // loop_pre_header
      _
    $region3: #{tpu_custom_call.1} parent=1 // loop_header
      %s15 = sphi 0, %s19
      %p16 = scmp.ge.s32.totalorder %s15, 4
      %s25 = sphi 0, %s27
      %s28 = sphi 0, %s25
      %s29 = sphi 0, %s28
      %s45 = sphi 0, %s29
      %s49 = sphi 0, %s49
      %s51 = sphi 0, %s49
      %s52 = sphi 0, %s51
      %s66 = sphi 0, %s52
      %s70 = sphi 0, %s70
      %s72 = sphi 0, %s70
      %s73 = sphi 0, %s72
      %s87 = sphi 0, %s73
      %s93 = sphi 0, %s95
      %s96 = sphi 0, %s93
      %s97 = sphi 0, %s96
      %s113 = sphi 0, %s97
    $region4: #{tpu_custom_call.1} parent=1 // loop_header_branch
      %18 = sbr.rel (%p16) target = $region8
    $region5: #{tpu_custom_call.1} parent=1 // loop_body
      %s20 = ssub.s32 %s15, 1
      %s21 = ssub.s32 %s15, 2
      %s22 = sadd.s32 %s15, 1
      %s23 = ssub.s32 %s15, %s22
      %p24 = scmp.eq.s32.totalorder %s23, 0
      %s26 = sadd.s32 %s25, 1
      %s27 = scalar_select %p24, %s25, %s26
      %p30 = pneg %p24
      %p31 = scmp.eq.s32.totalorder %s15, 1
      %p32 = por %p30, %p31
      %p33 = scmp.ne.s32.totalorder %s25, %s28
      %p34 = scmp.eq.s32.totalorder %s15, 0
      %p35 = por %p33, %p34
      %p36 = scmp.ne.s32.totalorder %s25, %s28
      %p37 = scmp.eq.s32.totalorder %s20, 1
      %p38 = por %p36, %p37
      %p39 = scmp.ne.s32.totalorder %s28, %s29
      %p40 = scmp.eq.s32.totalorder %s20, 0
      %p41 = por %p39, %p40
      %p42 = scmp.ne.s32.totalorder %s28, %s29
      %p43 = scmp.eq.s32.totalorder %s21, 1
      %p44 = por %p42, %p43
      %p46 = scmp.ne.s32.totalorder %s29, %s45
      %p47 = scmp.eq.s32.totalorder %s21, 0
      %p48 = por %p46, %p47
      %s50 = sadd.s32 %s49, 1
      %p53 = scmp.eq.s32.totalorder %s15, 1
      %p54 = scmp.ne.s32.totalorder %s49, %s51
      %p55 = scmp.eq.s32.totalorder %s15, 0
      %p56 = por %p54, %p55
      %p57 = scmp.ne.s32.totalorder %s49, %s51
      %p58 = scmp.eq.s32.totalorder %s20, 1
      %p59 = por %p57, %p58
      %p60 = scmp.ne.s32.totalorder %s51, %s52
      %p61 = scmp.eq.s32.totalorder %s20, 0
      %p62 = por %p60, %p61
      %p63 = scmp.ne.s32.totalorder %s51, %s52
      %p64 = scmp.eq.s32.totalorder %s21, 1
      %p65 = por %p63, %p64
      %p67 = scmp.ne.s32.totalorder %s52, %s66
      %p68 = scmp.eq.s32.totalorder %s21, 0
      %p69 = por %p67, %p68
      %s71 = sadd.s32 %s70, 1
      %p74 = scmp.eq.s32.totalorder %s15, 1
      %p75 = scmp.ne.s32.totalorder %s70, %s72
      %p76 = scmp.eq.s32.totalorder %s15, 0
      %p77 = por %p75, %p76
      %p78 = scmp.ne.s32.totalorder %s70, %s72
      %p79 = scmp.eq.s32.totalorder %s20, 1
      %p80 = por %p78, %p79
      %p81 = scmp.ne.s32.totalorder %s72, %s73
      %p82 = scmp.eq.s32.totalorder %s20, 0
      %p83 = por %p81, %p82
      %p84 = scmp.ne.s32.totalorder %s72, %s73
      %p85 = scmp.eq.s32.totalorder %s21, 1
      %p86 = por %p84, %p85
      %p88 = scmp.ne.s32.totalorder %s73, %s87
      %p89 = scmp.eq.s32.totalorder %s21, 0
      %p90 = por %p88, %p89
      %s91 = ssub.s32 %s15, %s22
      %p92 = scmp.eq.s32.totalorder %s91, 0
      %s94 = sadd.s32 %s93, 1
      %s95 = scalar_select %p92, %s93, %s94
      %p98 = pneg %p92
      %p99 = scmp.eq.s32.totalorder %s15, 1
      %p100 = por %p98, %p99
      %p101 = scmp.ne.s32.totalorder %s93, %s96
      %p102 = scmp.eq.s32.totalorder %s15, 0
      %p103 = por %p101, %p102
      %p104 = scmp.ne.s32.totalorder %s93, %s96
      %p105 = scmp.eq.s32.totalorder %s20, 1
      %p106 = por %p104, %p105
      %p107 = scmp.ne.s32.totalorder %s96, %s97
      %p108 = scmp.eq.s32.totalorder %s20, 0
      %p109 = por %p107, %p108
      %p110 = scmp.ne.s32.totalorder %s96, %s97
      %p111 = scmp.eq.s32.totalorder %s21, 1
      %p112 = por %p110, %p111
      %p114 = scmp.ne.s32.totalorder %s97, %s113
      %p115 = scmp.eq.s32.totalorder %s21, 0
      %p116 = por %p114, %p115
      %p117 = scmp.le.s32.totalorder 1, %s15
      %p118 = scmp.lt.s32.totalorder %s15, 3
      %p119 = pnand %p117, %p118
      %p120 = pneg %p119
      // Predicated region
      $region9: #{tpu_custom_call.1} parent=5 // pred_check
        _
      $region10: #{tpu_custom_call.1} parent=5 // pred_check_branch
        %122 = sbr.rel (%p119) target = $region12
      $region11: #{tpu_custom_call.1} parent=5 // pred_region
        %s123 = ssub.s32 %s15, 1
        // Predicated region
        $region13: #{tpu_custom_call.1} parent=11 // pred_check
          %p124 = pneg %p62
        $region14: #{tpu_custom_call.1} parent=11 // pred_check_branch
          %126 = sbr.rel (%p124) target = $region16
        $region15: #{tpu_custom_call.1} parent=11 // pred_region
          _
        $region16: #{tpu_custom_call.1} parent=11 // pred_fallthru
          _
        // Predicated region
        $region17: #{tpu_custom_call.1} parent=11 // pred_check
          %p127 = pneg %p83
        $region18: #{tpu_custom_call.1} parent=11 // pred_check_branch
          %129 = sbr.rel (%p127) target = $region20
        $region19: #{tpu_custom_call.1} parent=11 // pred_region
          _
        $region20: #{tpu_custom_call.1} parent=11 // pred_fallthru
          _
      $region12: #{tpu_custom_call.1} parent=5 // pred_fallthru
        _
      %p130 = scmp.lt.s32.totalorder %s15, 2
      // Predicated region
      $region21: #{tpu_custom_call.1} parent=5 // pred_check
        %p131 = pneg %p130
      $region22: #{tpu_custom_call.1} parent=5 // pred_check_branch
        %133 = sbr.rel (%p131) target = $region24
      $region23: #{tpu_custom_call.1} parent=5 // pred_region
        // Predicated region
        $region25: #{tpu_custom_call.1} parent=23 // pred_check
          %p134 = pneg %p35
        $region26: #{tpu_custom_call.1} parent=23 // pred_check_branch
          %136 = sbr.rel (%p134) target = $region28
        $region27: #{tpu_custom_call.1} parent=23 // pred_region
          %s137 = sand.u32 %s25, 1
          %s138 = scalar_lea.sflag [#allocation4], %s137
          %s139 = sand.u32 %s25, 1
          %s140 = smul.addr %s139, 12
          %s141 = scalar_lea.vmem [#allocation3], %s140
          %s143 = ssub.s32 192, 192
          %144 = vsyncadd %s138, %s143
          %s145 = smul.addr %s15, 3
          %s146 = smul.addr %s145, 64
          %s147 = scalar_lea.hbm %s0, %s146
          %s149 = sshll.u32 %s141, 4
          %s150 = int_to_ptr.vmem [resolvable:$true] %s149
          %152 = dma.hbm_to_vmem [thread:$0]  %s147, 192, %s150, %s138
        $region28: #{tpu_custom_call.1} parent=23 // pred_fallthru
          _
      $region24: #{tpu_custom_call.1} parent=5 // pred_fallthru
        _
      %p153 = scmp.le.s32.totalorder 1, %s15
      %p154 = scmp.lt.s32.totalorder %s15, 3
      %p155 = pnand %p153, %p154
      %p156 = pneg %p155
      // Predicated region
      $region29: #{tpu_custom_call.1} parent=5 // pred_check
        _
      $region30: #{tpu_custom_call.1} parent=5 // pred_check_branch
        %158 = sbr.rel (%p155) target = $region32
      $region31: #{tpu_custom_call.1} parent=5 // pred_region
        %s159 = ssub.s32 %s15, 1
        %s160 = sand.u32 %s28, 1
        %s161 = scalar_lea.sflag [#allocation4], %s160
        %s162 = sand.u32 %s28, 1
        %s163 = smul.addr %s162, 12
        %s164 = scalar_lea.vmem [#allocation3], %s163
        // Predicated region
        $region33: #{tpu_custom_call.1} parent=31 // pred_check
          %p165 = pneg %p41
        $region34: #{tpu_custom_call.1} parent=31 // pred_check_branch
          %167 = sbr.rel (%p165) target = $region36
        $region35: #{tpu_custom_call.1} parent=31 // pred_region
          %168 = dma.done %s161, 192
        $region36: #{tpu_custom_call.1} parent=31 // pred_fallthru
          _
        %s169 = sand.u32 %s28, 1
        %s170 = scalar_lea.sflag [#allocation4], %s169
        %s171 = sand.u32 %s28, 1
        %s172 = smul.addr %s171, 12
        %s173 = scalar_lea.vmem [#allocation3], %s172
        %p174 = pneg %p41
        %p175 = pneg %p38
        %p176 = pneg %p62
        %p177 = pneg %p59
        %p178 = pneg %p83
        %p179 = pneg %p80
        %p180 = pneg %p109
        %p181 = pneg %p106
        %s182 = sand.u32 %s96, 1
        %s183 = scalar_lea.sflag [#allocation5], %s182
        %s184 = sand.u32 %s96, 1
        %s185 = smul.addr %s184, 24
        %s186 = scalar_lea.vmem [#allocation6], %s185
        %v187 = vld [vmem:[%s2] sm:$0xff]
        %v188 = vld [vmem:[%s164] sm:$0xff]
        %v189 = vld [vmem:[%s164 + $0x8] sm:$0xf]
        %v191 = vcombine.high %v188, %v188
        %193 = vst [vmem:[#allocation2] sm:$0xf] %v188
        %194 = vst [vmem:[#allocation2 + $0x8] sm:$0xf] %v191
        %vm195 = vcmask 257024
        %196 = vst.msk [vmem:[#allocation2 + $0x10] sm:$0xf] %vm195, %v189
        %v197 = vld [vmem:[%s164] sm:$0xff]
        %v198 = vld [vmem:[%s164 + $0x8] sm:$0xf]
        %v201 = vcombine.low %v197, %v197
        %v202 = vcombine.low %v198, %v198
        %203 = vrot.lane.b32.xlu0 %v201, 127
        %v204 = vpop.permute.xlu0 %203
        %205 = vrot.lane.b32.xlu0 %v197, 127
        %v206 = vpop.permute.xlu0 %205
        %207 = vrot.lane.b32.xlu0 %v202, 127
        %v208 = vpop.permute.xlu0 %207
        %vm209 = vcmask 1039360
        %v210 = vsel %vm209, %v204, %v206
        %v211 = vsel %vm209, %v206, %v208
        %215 = vst [vmem:[#allocation2] sm:$0xf0] %v210
        %216 = vst [vmem:[#allocation2 + $0x8] sm:$0xf0] %v211
        %vm217 = vcmask 261124
        %218 = vst.msk [vmem:[#allocation2 + $0x10] sm:$0xf0] %vm217, %v208
        %v219 = vld [vmem:[%s164] sm:$0xff]
        %v220 = vld [vmem:[%s164 + $0x8] sm:$0xf]
        %v223 = vcombine.high %v219, %v219
        %224 = vrot.lane.b32.xlu0 %v219, 126
        %v225 = vpop.permute.xlu0 %224
        %226 = vrot.lane.b32.xlu0 %v223, 126
        %v227 = vpop.permute.xlu0 %226
        %228 = vrot.lane.b32.xlu0 %v220, 126
        %v229 = vpop.permute.xlu0 %228
        %vm230 = vcmask 1031168
        %v231 = vsel %vm230, %v225, %v227
        %v232 = vsel %vm230, %v227, %v229
        %236 = vst [vmem:[#allocation2 + $0x18] sm:$0xf] %v231
        %237 = vst [vmem:[#allocation2 + $0x20] sm:$0xf] %v232
        %238 = vst.msk [vmem:[#allocation2 + $0x28] sm:$0xf] %vm195, %v229
        %v239 = vld [vmem:[%s164] sm:$0xff]
        %v240 = vld [vmem:[%s164 + $0x8] sm:$0xf]
        %v243 = vcombine.low %v239, %v239
        %v244 = vcombine.low %v240, %v240
        %245 = vrot.lane.b32.xlu0 %v243, 110
        %v246 = vpop.permute.xlu0 %245
        %247 = vrot.lane.b32.xlu0 %v239, 110
        %v248 = vpop.permute.xlu0 %247
        %249 = vrot.lane.b32.xlu0 %v244, 110
        %v250 = vpop.permute.xlu0 %249
        %vm251 = vcmask 900096
        %v252 = vsel %vm251, %v246, %v248
        %v253 = vsel %vm251, %v248, %v250
        %257 = vst [vmem:[#allocation2 + $0x18] sm:$0xf0] %v252
        %258 = vst [vmem:[#allocation2 + $0x20] sm:$0xf0] %v253
        %259 = vst.msk [vmem:[#allocation2 + $0x28] sm:$0xf0] %vm217, %v250
        %v260 = vld [vmem:[%s164] sm:$0xff]
        %v261 = vld [vmem:[%s164 + $0x8] sm:$0xf]
        %v264 = vcombine.high %v260, %v260
        %265 = vrot.lane.b32.xlu0 %v260, 109
        %v266 = vpop.permute.xlu0 %265
        %267 = vrot.lane.b32.xlu0 %v264, 109
        %v268 = vpop.permute.xlu0 %267
        %269 = vrot.lane.b32.xlu0 %v261, 109
        %v270 = vpop.permute.xlu0 %269
        %vm271 = vcmask 891904
        %v272 = vsel %vm271, %v266, %v268
        %v273 = vsel %vm271, %v268, %v270
        %277 = vst [vmem:[#allocation2 + $0x30] sm:$0xf] %v272
        %278 = vst [vmem:[#allocation2 + $0x38] sm:$0xf] %v273
        %279 = vst.msk [vmem:[#allocation2 + $0x40] sm:$0xf] %vm195, %v270
        %v280 = vld [vmem:[%s164] sm:$0xff]
        %v281 = vld [vmem:[%s164 + $0x8] sm:$0xf]
        %v284 = vcombine.low %v280, %v280
        %v285 = vcombine.low %v281, %v281
        %286 = vrot.lane.b32.xlu0 %v284, 108
        %v287 = vpop.permute.xlu0 %286
        %288 = vrot.lane.b32.xlu0 %v280, 108
        %v289 = vpop.permute.xlu0 %288
        %290 = vrot.lane.b32.xlu0 %v285, 108
        %v291 = vpop.permute.xlu0 %290
        %vm292 = vcmask 883712
        %v293 = vsel %vm292, %v287, %v289
        %v294 = vsel %vm292, %v289, %v291
        %298 = vst [vmem:[#allocation2 + $0x30] sm:$0xf0] %v293
        %299 = vst [vmem:[#allocation2 + $0x38] sm:$0xf0] %v294
        %300 = vst.msk [vmem:[#allocation2 + $0x40] sm:$0xf0] %vm217, %v291
        %v301 = vld [vmem:[%s164] sm:$0xff]
        %v302 = vld [vmem:[%s164 + $0x8] sm:$0xf]
        %v305 = vcombine.high %v301, %v301
        %306 = vrot.lane.b32.xlu0 %v301, 92
        %v307 = vpop.permute.xlu0 %306
        %308 = vrot.lane.b32.xlu0 %v305, 92
        %v309 = vpop.permute.xlu0 %308
        %310 = vrot.lane.b32.xlu0 %v302, 92
        %v311 = vpop.permute.xlu0 %310
        %vm312 = vcmask 752640
        %v313 = vsel %vm312, %v307, %v309
        %v314 = vsel %vm312, %v309, %v311
        %318 = vst [vmem:[#allocation2 + $0x48] sm:$0xf] %v313
        %319 = vst [vmem:[#allocation2 + $0x50] sm:$0xf] %v314
        %320 = vst.msk [vmem:[#allocation2 + $0x58] sm:$0xf] %vm195, %v311
        %v321 = vld [vmem:[%s164] sm:$0xff]
        %v322 = vld [vmem:[%s164 + $0x8] sm:$0xf]
        %v325 = vcombine.low %v321, %v321
        %v326 = vcombine.low %v322, %v322
        %327 = vrot.lane.b32.xlu0 %v325, 91
        %v328 = vpop.permute.xlu0 %327
        %329 = vrot.lane.b32.xlu0 %v321, 91
        %v330 = vpop.permute.xlu0 %329
        %331 = vrot.lane.b32.xlu0 %v326, 91
        %v332 = vpop.permute.xlu0 %331
        %vm333 = vcmask 744448
        %v334 = vsel %vm333, %v328, %v330
        %v335 = vsel %vm333, %v330, %v332
        %339 = vst [vmem:[#allocation2 + $0x48] sm:$0xf0] %v334
        %340 = vst [vmem:[#allocation2 + $0x50] sm:$0xf0] %v335
        %341 = vst.msk [vmem:[#allocation2 + $0x58] sm:$0xf0] %vm217, %v332
        %v342 = vld [vmem:[%s164] sm:$0xff]
        %v343 = vld [vmem:[%s164 + $0x8] sm:$0xf]
        %v346 = vcombine.high %v342, %v342
        %347 = vrot.lane.b32.xlu0 %v342, 90
        %v348 = vpop.permute.xlu0 %347
        %349 = vrot.lane.b32.xlu0 %v346, 90
        %v350 = vpop.permute.xlu0 %349
        %351 = vrot.lane.b32.xlu0 %v343, 90
        %v352 = vpop.permute.xlu0 %351
        %vm353 = vcmask 736256
        %v354 = vsel %vm353, %v348, %v350
        %v355 = vsel %vm353, %v350, %v352
        %359 = vst [vmem:[#allocation2 + $0x60] sm:$0xf] %v354
        %360 = vst [vmem:[#allocation2 + $0x68] sm:$0xf] %v355
        %361 = vst.msk [vmem:[#allocation2 + $0x70] sm:$0xf] %vm195, %v352
        %v362 = vld [vmem:[%s1] sm:$0xff]
        %v363 = vld [vmem:[#allocation2] sm:$0xff]
        %v364 = vld [vmem:[#allocation2 + $0x8] sm:$0xff]
        %v365 = vld [vmem:[#allocation2 + $0x10] sm:$0xff]
        %v366 = vld [vmem:[#allocation2 + $0x18] sm:$0xff]
        %v367 = vld [vmem:[#allocation2 + $0x20] sm:$0xff]
        %v368 = vld [vmem:[#allocation2 + $0x28] sm:$0xff]
        %v369 = vld [vmem:[#allocation2 + $0x30] sm:$0xff]
        %v370 = vld [vmem:[#allocation2 + $0x38] sm:$0xff]
        %v371 = vld [vmem:[#allocation2 + $0x40] sm:$0xff]
        %v372 = vld [vmem:[#allocation2 + $0x48] sm:$0xff]
        %v373 = vld [vmem:[#allocation2 + $0x50] sm:$0xff]
        %v374 = vld [vmem:[#allocation2 + $0x58] sm:$0xff]
        %v375 = vld [vmem:[#allocation2 + $0x60] sm:$0xf]
        %v376 = vld [vmem:[#allocation2 + $0x68] sm:$0xf]
        %v377 = vld [vmem:[#allocation2 + $0x70] sm:$0xf]
        %379 = vset.pattern.permute.xlu0 0
        %380 = vperm.xlu0 %379, %v187
        %v381 = vpop.permute.xlu0 %380
        %vm383 = vcmask 293888
        %v385 = vsel %vm383, %v362, 0
        %vm387 = vcmask 1043456
        %v389 = vsel %vm387, %v375, 0
        %v392 = vsel %vm387, %v376, 0
        %v395 = vsel %vm387, %v377, 0
        %397 = vmatprep.subr.mxu0 0.0
        %398 = vmatpush1.msra.mxu0 0.0
        %399 = vmatprep.subr.mxu0 0.0
        %400 = vmatpush1.msra.mxu0 0.0
        %401 = vmatprep.subr.mxu0 0.0
        %402 = vmatpush1.msra.mxu0 0.0
        %403 = vmatprep.subr.mxu0 0.0
        %404 = vmatpush1.msra.mxu0 0.0
        %405 = vmatprep.subr.mxu0 0.0
        %406 = vmatpush1.msra.mxu0 0.0
        %407 = vmatprep.subr.mxu0 0.0
        %408 = vmatpush1.msra.mxu0 0.0
        %409 = vmatprep.subr.mxu0 0.0
        %410 = vmatpush1.msra.mxu0 0.0
        %411 = vmatprep.subr.mxu0 0.0
        %412 = vmatpush1.msra.mxu0 0.0
        %413 = vmatprep.subr.mxu0 0.0
        %414 = vmatpush1.msra.mxu0 0.0
        %415 = vmatprep.subr.mxu0 0.0
        %416 = vmatpush1.msra.mxu0 0.0
        %417 = vmatprep.subr.mxu0 0.0
        %418 = vmatpush1.msra.mxu0 0.0
        %419 = vmatprep.subr.mxu0 %v392
        %420 = vmatpush1.msra.mxu0 %v389
        %421 = vmatprep.subr.mxu0 %v373
        %422 = vmatpush1.msra.mxu0 %v372
        %423 = vmatprep.subr.mxu0 %v370
        %424 = vmatpush1.msra.mxu0 %v369
        %425 = vmatprep.subr.mxu0 %v367
        %426 = vmatpush1.msra.mxu0 %v366
        %427 = vmatprep.subr.mxu0 %v364
        %428 = vmatpush1.msra.mxu0 %v363
        %429 = vmatprep.subr.mxu0 0.0
        %430 = vmatpush2.msra.mxu0 0.0
        %431 = vmatprep.subr.mxu0 0.0
        %432 = vmatpush2.msra.mxu0 0.0
        %433 = vmatprep.subr.mxu0 0.0
        %434 = vmatpush2.msra.mxu0 0.0
        %435 = vmatprep.subr.mxu0 0.0
        %436 = vmatpush2.msra.mxu0 0.0
        %437 = vmatprep.subr.mxu0 0.0
        %438 = vmatpush2.msra.mxu0 0.0
        %439 = vmatprep.subr.mxu0 0.0
        %440 = vmatpush2.msra.mxu0 0.0
        %441 = vmatprep.subr.mxu0 0.0
        %442 = vmatpush2.msra.mxu0 0.0
        %443 = vmatprep.subr.mxu0 0.0
        %444 = vmatpush2.msra.mxu0 0.0
        %445 = vmatprep.subr.mxu0 0.0
        %446 = vmatpush2.msra.mxu0 0.0
        %447 = vmatprep.subr.mxu0 0.0
        %448 = vmatpush2.msra.mxu0 0.0
        %449 = vmatprep.subr.mxu0 0.0
        %450 = vmatpush2.msra.mxu0 0.0
        %451 = vmatprep.subr.mxu0 0.0
        %452 = vmatpush2.msra.mxu0 0.0
        %453 = vmatprep.subr.mxu0 0.0
        %454 = vmatpush2.msra.mxu0 0.0
        %455 = vmatprep.subr.mxu0 0.0
        %456 = vmatpush2.msra.mxu0 0.0
        %457 = vmatprep.subr.mxu0 0.0
        %458 = vmatpush2.msra.mxu0 0.0
        %459 = vmatprep.subr.mxu0 0.0
        %460 = vmatpush2.msra.mxu0 0.0
        %461 = vmatprep.mubr.f32.mxu0 0.0
        %462 = vmatmul.mubr.f32.gmra.mxu0 %v385
        %v463 = vpop.f32.mrf.mxu0
        %v464 = vadd.f32 %v381, %v463
        %v465 = vpop.f32.mrf.mxu0
        %v466 = vadd.f32 %v381, %v465
        %467 = vdwg.mxu0
        %468 = vmatprep.subr.mxu0 0.0
        %469 = vmatpush1.msra.mxu0 0.0
        %470 = vmatprep.subr.mxu0 0.0
        %471 = vmatpush1.msra.mxu0 0.0
        %472 = vmatprep.subr.mxu0 0.0
        %473 = vmatpush1.msra.mxu0 0.0
        %474 = vmatprep.subr.mxu0 0.0
        %475 = vmatpush1.msra.mxu0 0.0
        %476 = vmatprep.subr.mxu0 0.0
        %477 = vmatpush1.msra.mxu0 0.0
        %478 = vmatprep.subr.mxu0 0.0
        %479 = vmatpush1.msra.mxu0 0.0
        %480 = vmatprep.subr.mxu0 0.0
        %481 = vmatpush1.msra.mxu0 0.0
        %482 = vmatprep.subr.mxu0 0.0
        %483 = vmatpush1.msra.mxu0 0.0
        %484 = vmatprep.subr.mxu0 0.0
        %485 = vmatpush1.msra.mxu0 0.0
        %486 = vmatprep.subr.mxu0 0.0
        %487 = vmatpush1.msra.mxu0 0.0
        %488 = vmatprep.subr.mxu0 0.0
        %489 = vmatpush1.msra.mxu0 0.0
        %490 = vmatprep.subr.mxu0 0.0
        %491 = vmatpush1.msra.mxu0 %v395
        %492 = vmatprep.subr.mxu0 0.0
        %493 = vmatpush1.msra.mxu0 %v374
        %494 = vmatprep.subr.mxu0 0.0
        %495 = vmatpush1.msra.mxu0 %v371
        %496 = vmatprep.subr.mxu0 0.0
        %497 = vmatpush1.msra.mxu0 %v368
        %498 = vmatprep.subr.mxu0 0.0
        %499 = vmatpush1.msra.mxu0 %v365
        %500 = vmatprep.subr.mxu0 0.0
        %501 = vmatpush2.msra.mxu0 0.0
        %502 = vmatprep.subr.mxu0 0.0
        %503 = vmatpush2.msra.mxu0 0.0
        %504 = vmatprep.subr.mxu0 0.0
        %505 = vmatpush2.msra.mxu0 0.0
        %506 = vmatprep.subr.mxu0 0.0
        %507 = vmatpush2.msra.mxu0 0.0
        %508 = vmatprep.subr.mxu0 0.0
        %509 = vmatpush2.msra.mxu0 0.0
        %510 = vmatprep.subr.mxu0 0.0
        %511 = vmatpush2.msra.mxu0 0.0
        %512 = vmatprep.subr.mxu0 0.0
        %513 = vmatpush2.msra.mxu0 0.0
        %514 = vmatprep.subr.mxu0 0.0
        %515 = vmatpush2.msra.mxu0 0.0
        %516 = vmatprep.subr.mxu0 0.0
        %517 = vmatpush2.msra.mxu0 0.0
        %518 = vmatprep.subr.mxu0 0.0
        %519 = vmatpush2.msra.mxu0 0.0
        %520 = vmatprep.subr.mxu0 0.0
        %521 = vmatpush2.msra.mxu0 0.0
        %522 = vmatprep.subr.mxu0 0.0
        %523 = vmatpush2.msra.mxu0 0.0
        %524 = vmatprep.subr.mxu0 0.0
        %525 = vmatpush2.msra.mxu0 0.0
        %526 = vmatprep.subr.mxu0 0.0
        %527 = vmatpush2.msra.mxu0 0.0
        %528 = vmatprep.subr.mxu0 0.0
        %529 = vmatpush2.msra.mxu0 0.0
        %530 = vmatprep.subr.mxu0 0.0
        %531 = vmatpush2.msra.mxu0 0.0
        %532 = vmatprep.mubr.f32.mxu0 0.0
        %533 = vmatmul.mubr.f32.gmra.mxu0 %v385
        %v534 = vpop.f32.mrf.mxu0
        %v535 = vadd.f32 %v381, %v534
        %v536 = vpop.f32.mrf.mxu0
        %537 = vdwg.mxu0
        %vm538 = vcmp.ge.f32.partialorder %v464, 0.0
        %vm539 = vcmp.ge.f32.partialorder %v466, 0.0
        %vm540 = vcmp.ge.f32.partialorder %v535, 0.0
        %v541 = vmul.f32 %v464, 0.01
        %v542 = vmul.f32 %v466, 0.01
        %v543 = vmul.f32 %v535, 0.01
        %v544 = vsel %vm538, %v464, %v541
        %v545 = vsel %vm539, %v466, %v542
        %v546 = vsel %vm540, %v535, %v543
        %547 = vst [vmem:[%s186] sm:$0xff] %v544
        %548 = vst [vmem:[%s186 + $0x8] sm:$0xff] %v545
        %vm549 = vcmask 261120
        %550 = vst.msk [vmem:[%s186 + $0x10] sm:$0xff] %vm549, %v546
        %s551 = sand.u32 %s96, 1
        %s552 = scalar_lea.sflag [#allocation5], %s551
        %s553 = sand.u32 %s96, 1
        %s554 = smul.addr %s553, 24
        %s555 = scalar_lea.vmem [#allocation6], %s554
        // Predicated region
        $region37: #{tpu_custom_call.1} parent=31 // pred_check
          %p556 = pneg %p106
        $region38: #{tpu_custom_call.1} parent=31 // pred_check_branch
          %558 = sbr.rel (%p556) target = $region40
        $region39: #{tpu_custom_call.1} parent=31 // pred_region
          %s560 = ssub.s32 384, 384
          %561 = vsyncadd %s552, %s560
          %s562 = smul.addr %s20, 3
          %s563 = smul.addr %s562, 128
          %s564 = scalar_lea.hbm %s3, %s563
          %s566 = sshll.u32 %s555, 4
          %s567 = int_to_ptr.vmem [resolvable:$true] %s566
          %569 = dma.vmem_to_hbm [thread:$0]  %s567, 384, %s564, %s552
        $region40: #{tpu_custom_call.1} parent=31 // pred_fallthru
          _
      $region32: #{tpu_custom_call.1} parent=5 // pred_fallthru
        _
      %p570 = scmp.le.s32.totalorder 2, %s15
      // Predicated region
      $region41: #{tpu_custom_call.1} parent=5 // pred_check
        %p571 = pneg %p570
      $region42: #{tpu_custom_call.1} parent=5 // pred_check_branch
        %573 = sbr.rel (%p571) target = $region44
      $region43: #{tpu_custom_call.1} parent=5 // pred_region
        %s574 = ssub.s32 %s15, 2
        // Predicated region
        $region45: #{tpu_custom_call.1} parent=43 // pred_check
          %p575 = pneg %p112
        $region46: #{tpu_custom_call.1} parent=43 // pred_check_branch
          %577 = sbr.rel (%p575) target = $region48
        $region47: #{tpu_custom_call.1} parent=43 // pred_region
          %s578 = sand.u32 %s97, 1
          %s579 = scalar_lea.sflag [#allocation5], %s578
          %s580 = sand.u32 %s97, 1
          %s581 = smul.addr %s580, 24
          %s582 = scalar_lea.vmem [#allocation6], %s581
          %583 = dma.done %s579, 384
        $region48: #{tpu_custom_call.1} parent=43 // pred_fallthru
          _
      $region44: #{tpu_custom_call.1} parent=5 // pred_fallthru
        _
    $region6: #{tpu_custom_call.1} parent=1 // loop_footer
      %s19 = sadd.s32 1, %s15
    $region7: #{tpu_custom_call.1} parent=1 // loop_footer_branch
      %14 = sbr.rel target = $region3
    $region8: #{tpu_custom_call.1} parent=1 // loop_exit
      _
    %584 = vsyncpa [#allocation4], 1
    %s585 = scalar_lea.sflag [#allocation4], 1
    %586 = vsyncpa %s585, 1
    %587 = vsyncpa [#allocation5], 1
    %s588 = scalar_lea.sflag [#allocation5], 1
    %589 = vsyncpa %s588, 1

</llo_original>
